<compile_context>
chip_gen: v6e
topology: v6e:2x2x1
jax: 0.10.0
libtpu: 0.0.40
codegen_flags: <defaults>
</compile_context>

<pallas_src>
import math

import jax
import jax.numpy as jnp
from jax.experimental import pallas as pl
from jax.experimental.pallas import tpu as pltpu

_LANES = 128
_SUBLANE_MULT = 32            # covers f32 (8) / bf16 (16) / int8,fp8 (32) packing
_SMALL_BYTES = 256 << 10      # grid-less single block at/below this size per operand
_BLOCK_BYTES = 2 << 20        # ~2 MiB per streamed operand per grid block
_VMEM_LIMIT = 24 << 20        # 4 streams x 2 buffers x ~2 MiB = ~16 MiB + headroom


def _cdiv(a, b):
    return -(-a // b)


def _round_up(n, m):
    return _cdiv(n, m) * m


def _make_kernel(is_scalar):
    """Build the FMA kernel; operands flagged in `is_scalar` are SMEM scalars."""

    def kernel(a_ref, b_ref, x_ref, o_ref):
        a = a_ref[0, 0] if is_scalar[0] else a_ref[...]
        b = b_ref[0, 0] if is_scalar[1] else b_ref[...]
        x = x_ref[0, 0] if is_scalar[2] else x_ref[...]
        # Pure VPU fused multiply-add on the whole tile (no MXU / XLU).
        o_ref[...] = (a * b + x).astype(o_ref.dtype)

    return kernel


def _pick_leading_block(extent, row_bytes, min_mult):
    """Leading-dim block: ~_BLOCK_BYTES per operand, multiple of `min_mult`, and a
    grid with an even (>= 2) number of blocks so v7x's two TensorCores balance."""
    blk = max(min_mult, ((_BLOCK_BYTES // max(row_bytes, 1)) // min_mult) * min_mult)
    blk = min(blk, extent)
    nb = _cdiv(extent, blk)
    if nb == 1 and extent >= 2 * min_mult:
        nb = 2                      # engage both v7x TensorCores on mid-size inputs
    elif nb > 1 and nb % 2:
        nb += 1                     # avoid an odd tail block on a 2-core shard
    blk = min(extent, _round_up(_cdiv(extent, nb), min_mult))
    return blk


def bar_forward(a, b, x):
    """Computes a * b + x with a Pallas TPU kernel (jnp broadcasting rules)."""
    a, b, x = jnp.asarray(a), jnp.asarray(b), jnp.asarray(x)
    out_shape = jnp.broadcast_shapes(a.shape, b.shape, x.shape)
    # NOTE: NumPy-style promotion; differs from torch in some mixed int/low-precision
    # corner cases (e.g. int8*int8 overflow semantics, weak-scalar promotion).
    out_dtype = jnp.result_type(a, b, x)
    total = math.prod(out_shape) if out_shape else 1

    if total == 0:
        return jnp.zeros(out_shape, out_dtype)
    if total == 1:
        # Degenerate all-scalar case: nothing to tile.
        return jnp.asarray(a * b + x).astype(out_dtype).reshape(out_shape)

    # ---- classify operands: SMEM scalars vs streamed full-size tensors --------
    operands, is_scalar = [], []
    for t in (a, b, x):
        if t.size == 1:
            # Broadcast scalar: keep it out of the HBM stream entirely (SMEM).
            sdt = (jnp.int32 if (jnp.issubdtype(t.dtype, jnp.integer)
                                 or t.dtype == jnp.bool_) else jnp.float32)
            operands.append(t.reshape(1, 1).astype(sdt))
            is_scalar.append(True)
        else:
            if t.dtype != out_dtype:
                t = t.astype(out_dtype)
            if t.shape != out_shape:
                # TODO(synk): per-channel broadcasts could stay un-materialized via a
                # constant index_map; only the size-1 (scalar) case is handled here.
                t = jnp.broadcast_to(t, out_shape)
            operands.append(t)
            is_scalar.append(False)
    is_scalar = tuple(is_scalar)
    kernel = _make_kernel(is_scalar)

    itemsize = jnp.dtype(out_dtype).itemsize
    total_bytes = total * itemsize

    smem_spec = pl.BlockSpec(memory_space=pltpu.MemorySpace.SMEM)

    def _in_specs(stream_spec):
        return [smem_spec if s else stream_spec for s in is_scalar]

    # ---------------- small path: one full-array VMEM block, no grid ----------
    if total_bytes <= _SMALL_BYTES:
        if total % _LANES == 0:
            shape2 = (total // _LANES, _LANES)   # lane-dense slab, unmasked stores
        else:
            shape2 = (1, total)                  # only the last partial vreg is masked
        vmem_spec = pl.BlockSpec(memory_space=pltpu.MemorySpace.VMEM)
        ops = [op if sc else op.reshape(shape2) for op, sc in zip(operands, is_scalar)]
        out = pl.pallas_call(
            kernel,
            out_shape=jax.ShapeDtypeStruct(shape2, out_dtype),
            in_specs=_in_specs(vmem_spec),
            out_specs=vmem_spec,
        )(*ops)
        return out.reshape(out_shape)

    # ---------------- large paths: 1-D parallel grid ---------------------------
    n_streams = sum(1 for s in is_scalar if not s) + 1      # streamed inputs + output
    cost = pl.CostEstimate(flops=2 * total, transcendentals=0,
                           bytes_accessed=n_streams * total_bytes)
    cparams = pltpu.CompilerParams(
        dimension_semantics=("parallel",),
        vmem_limit_bytes=_VMEM_LIMIT,
    )

    if total % _LANES == 0:
        # Lane-dense (rows, 128) slab; contiguous reshape is free.
        rows = total // _LANES
        block_rows = _pick_leading_block(rows, _LANES * itemsize, _SUBLANE_MULT)
        tile = pl.BlockSpec((block_rows, _LANES), lambda i: (i, 0))
        ops = [op if sc else op.reshape(rows, _LANES)
               for op, sc in zip(operands, is_scalar)]
        out = pl.pallas_call(
            kernel,
            out_shape=jax.ShapeDtypeStruct((rows, _LANES), out_dtype),
            grid=(_cdiv(rows, block_rows),),
            in_specs=_in_specs(tile),
            out_specs=tile,
            compiler_params=cparams,
            cost_estimate=cost,
        )(*ops)
        return out.reshape(out_shape)

    # Non-128-divisible total: block the leading dim of the ORIGINAL layout.
    # Trailing block dims equal the full array dims (always legal); the partial
    # last block is masked by Pallas.  Zero pad/flatten/slice HBM round-trips.
    if len(out_shape) >= 2:
        d0 = out_shape[0]
        row_bytes = (total // d0) * itemsize
        if row_bytes <= _BLOCK_BYTES:
            ndim = len(out_shape)
            min_mult = _SUBLANE_MULT if ndim == 2 else 1   # 2-D: blocked dim is 2nd-minor
            bd0 = _pick_leading_block(d0, row_bytes, min_mult)
            block_shape = (bd0,) + tuple(out_shape[1:])
            tile = pl.BlockSpec(block_shape, lambda i: (i,) + (0,) * (ndim - 1))
            return pl.pallas_call(
                kernel,
                out_shape=jax.ShapeDtypeStruct(out_shape, out_dtype),
                grid=(_cdiv(d0, bd0),),
                in_specs=_in_specs(tile),
                out_specs=tile,
                compiler_params=cparams,
                cost_estimate=cost,
            )(*operands)

    # Rare fallback (large 1-D non-128-divisible total, or a single leading row
    # exceeding the block budget): pad to a lane-dense slab.  Costs extra HBM passes.
    # TODO(synk): replace with a masked tail block to avoid the pad/slice round-trips.
    rows = _cdiv(total, _LANES)
    pad = rows * _LANES - total

    def _slab(t):
        t = t.reshape(-1)
        if pad:
            t = jnp.pad(t, (0, pad))
        return t.reshape(rows, _LANES)

    ops = [op if sc else _slab(op) for op, sc in zip(operands, is_scalar)]
    block_rows = _pick_leading_block(rows, _LANES * itemsize, _SUBLANE_MULT)
    tile = pl.BlockSpec((block_rows, _LANES), lambda i: (i, 0))
    out = pl.pallas_call(
        kernel,
        out_shape=jax.ShapeDtypeStruct((rows, _LANES), out_dtype),
        grid=(_cdiv(rows, block_rows),),
        in_specs=_in_specs(tile),
        out_specs=tile,
        compiler_params=cparams,
        cost_estimate=cost,
    )(*ops)
    return out.reshape(-1)[:total].reshape(out_shape)


class Bar:
    """JAX/Pallas equivalent of the PyTorch Bar module: forward(a, b) = a*b + x."""

    def __init__(self, x):
        self.x = x

    def __call__(self, a, b):
        return bar_forward(a, b, self.x)


if __name__ == "__main__":
    key = jax.random.PRNGKey(0)
    ka, kb, kx, k2a, k2b, k2x = jax.random.split(key, 6)

    # 1) Spec workload: small NCHW tensors, x same shape -> grid-less slab path.
    shape = (2, 4, 16, 16)
    a = jax.random.normal(ka, shape, dtype=jnp.float32)
    b = jax.random.normal(kb, shape, dtype=jnp.float32)
    x = jax.random.normal(kx, shape, dtype=jnp.float32)
    out = jax.block_until_ready(Bar(x)(a, b))
    ref = a * b + x
    assert out.shape == ref.shape and out.dtype == ref.dtype
    assert jnp.allclose(out, ref, atol=1e-6, rtol=1e-6)

    # 2) Scalar x (broadcast) -> SMEM-resident scalar, no broadcast materialization.
    xs = jnp.float32(0.75)
    out_s = jax.block_until_ready(Bar(xs)(a, b))
    assert jnp.allclose(out_s, a * b + xs, atol=1e-6, rtol=1e-6)

    # 3) Non-128-divisible small shape -> (1, total) single-block path.
    shape_odd = (2, 3, 5, 7)
    ao = jax.random.normal(ka, shape_odd, dtype=jnp.float32)
    bo = jax.random.normal(kb, shape_odd, dtype=jnp.float32)
    xo = jax.random.normal(kx, shape_odd, dtype=jnp.float32)
    out_o = jax.block_until_ready(Bar(xo)(ao, bo))
    assert jnp.allclose(out_o, ao * bo + xo, atol=1e-6, rtol=1e-6)

    # 4) Gridded lane-dense path (1 MiB per operand -> even grid of 2 blocks).
    shape_big = (8, 8, 32, 128)
    ab = jax.random.normal(k2a, shape_big, dtype=jnp.float32)
    bb = jax.random.normal(k2b, shape_big, dtype=jnp.float32)
    xb = jax.random.normal(k2x, shape_big, dtype=jnp.float32)
    out_b = jax.block_until_ready(Bar(xb)(ab, bb))
    assert jnp.allclose(out_b, ab * bb + xb, atol=1e-6, rtol=1e-6)

    print("KERNEL_OK")
</pallas_src>

<mosaic_0001>
module attributes {stable_mosaic.version = 11 : i64} {
  func.func @kernel(%arg0: memref<16x128xf32, #tpu.memory_space<vmem>>, %arg1: memref<16x128xf32, #tpu.memory_space<vmem>>, %arg2: memref<16x128xf32, #tpu.memory_space<vmem>>, %arg3: memref<16x128xf32, #tpu.memory_space<vmem>>) attributes {dimension_semantics = [], scalar_prefetch = 0 : i64, scratch_operands = 0 : i64, tpu.core_type = #tpu.core_type<tc>} {
    %c0 = arith.constant 0 : index
    %c0_0 = arith.constant 0 : index
    %0 = vector.load %arg0[%c0, %c0_0] : memref<16x128xf32, #tpu.memory_space<vmem>>, vector<16x128xf32>
    %c0_1 = arith.constant 0 : index
    %c0_2 = arith.constant 0 : index
    %1 = vector.load %arg1[%c0_1, %c0_2] : memref<16x128xf32, #tpu.memory_space<vmem>>, vector<16x128xf32>
    %c0_3 = arith.constant 0 : index
    %c0_4 = arith.constant 0 : index
    %2 = vector.load %arg2[%c0_3, %c0_4] : memref<16x128xf32, #tpu.memory_space<vmem>>, vector<16x128xf32>
    %3 = arith.mulf %0, %1 : vector<16x128xf32>
    %4 = arith.addf %3, %2 : vector<16x128xf32>
    %c0_5 = arith.constant 0 : index
    %c0_6 = arith.constant 0 : index
    %5 = vector.load %arg3[%c0_5, %c0_6] : memref<16x128xf32, #tpu.memory_space<vmem>>, vector<16x128xf32>
    tpu.vector_store %arg3[%c0_5, %c0_6], %4 {strides = array<i32>} : memref<16x128xf32, #tpu.memory_space<vmem>>, vector<16x128xf32>,
    return
  }
}

</mosaic_0001>

<llo_original>
// kernel: tpu_custom_call.1
$region0: #{tpu_custom_call.1}
  #allocation0 [shape = 'u32[]', space=smem, size = 0x4, offset = 0x4, fixed_abs, tag = 'smem constant byte address 0x4 - core index']
  #allocation1 [shape = 'u32[144,128]{1,0:T(1,128)}', space=vmem, size = 0x12000, scoped, tag = 'internal scratch']
  %s0 = inlined_call_operand.hbm [shape: f32[16,128], index: 0, kind: input, shape index: {}]
  %s1 = inlined_call_operand.hbm [shape: f32[16,128], index: 1, kind: input, shape index: {}]
  %s2 = inlined_call_operand.hbm [shape: f32[16,128], index: 2, kind: input, shape index: {}]
  %s3 = inlined_call_operand.hbm [shape: f32[16,128], index: 3, kind: output, shape index: {}]
  %s4 = sld [smem:[#allocation0]]
  $region34: #{tpu_custom_call.1} parent=0
    _
  %s6 = ssub.s32 1, %s4
  %s7 = scalar_select 0, %s6, %s4
  $region1: #{tpu_custom_call.1} parent=0
    #allocation2 [shape = 'u8[8192]{0}', space=vmem, size = 0x2000, scoped, tag = 'input window, operand 0, single buffered']
    #allocation3 [shape = 's32[1]{0}', space=sflag, size = 0x4, scoped, tag = 'scoped memory for tpu_custom_call.1']
    #allocation4 [shape = 's32[1]{0}', space=sflag, size = 0x4, scoped, tag = 'scoped memory for tpu_custom_call.1']
    #allocation5 [shape = 'u8[8192]{0}', space=vmem, size = 0x2000, scoped, tag = 'input window, operand 1, single buffered']
    #allocation6 [shape = 's32[1]{0}', space=sflag, size = 0x4, scoped, tag = 'scoped memory for tpu_custom_call.1']
    #allocation7 [shape = 'u8[8192]{0}', space=vmem, size = 0x2000, scoped, tag = 'input window, operand 2, single buffered']
    #allocation8 [shape = 'u8[8192]{0}', space=vmem, size = 0x2000, scoped, tag = 'output window, operand 0, single buffered']
    %8 = vsyncpa [#allocation3], 0
    %9 = vsyncpa [#allocation6], 0
    %10 = vsyncpa [#allocation4], 0
    // Predicated region
    $region2: #{tpu_custom_call.1} parent=1 // pred_check
      _
    $region3: #{tpu_custom_call.1} parent=1 // pred_check_branch
      %12 = sbr.rel (0) target = $region5
    $region4: #{tpu_custom_call.1} parent=1 // pred_region
      %s14 = ssub.s32 256, 256
      %15 = vsyncadd [#allocation3], %s14
      %s16 = sshll.u32 [#allocation2], 4
      %s17 = int_to_ptr.vmem [resolvable:$true] %s16
      %22 = dma.hbm_to_vmem [thread:$0]  %s0, 256, %s17, [#allocation3], 128, 128, 8
    $region5: #{tpu_custom_call.1} parent=1 // pred_fallthru
      _
    // Predicated region
    $region6: #{tpu_custom_call.1} parent=1 // pred_check
      _
    $region7: #{tpu_custom_call.1} parent=1 // pred_check_branch
      %24 = sbr.rel (0) target = $region9
    $region8: #{tpu_custom_call.1} parent=1 // pred_region
      %s26 = ssub.s32 256, 256
      %27 = vsyncadd [#allocation6], %s26
      %s28 = sshll.u32 [#allocation5], 4
      %s29 = int_to_ptr.vmem [resolvable:$true] %s28
      %34 = dma.hbm_to_vmem [thread:$0]  %s1, 256, %s29, [#allocation6], 128, 128, 8
    $region9: #{tpu_custom_call.1} parent=1 // pred_fallthru
      _
    // Predicated region
    $region10: #{tpu_custom_call.1} parent=1 // pred_check
      _
    $region11: #{tpu_custom_call.1} parent=1 // pred_check_branch
      %36 = sbr.rel (0) target = $region13
    $region12: #{tpu_custom_call.1} parent=1 // pred_region
      %s38 = ssub.s32 256, 256
      %39 = vsyncadd [#allocation6], %s38
      %s40 = sshll.u32 [#allocation7], 4
      %s41 = int_to_ptr.vmem [resolvable:$true] %s40
      %46 = dma.hbm_to_vmem [thread:$0]  %s2, 256, %s41, [#allocation6], 128, 128, 8
    $region13: #{tpu_custom_call.1} parent=1 // pred_fallthru
      _
    // Predicated region
    $region14: #{tpu_custom_call.1} parent=1 // pred_check
      _
    $region15: #{tpu_custom_call.1} parent=1 // pred_check_branch
      %48 = sbr.rel (0) target = $region17
    $region16: #{tpu_custom_call.1} parent=1 // pred_region
      %49 = dma.done [#allocation3], 256
    $region17: #{tpu_custom_call.1} parent=1 // pred_fallthru
      _
    // Predicated region
    $region18: #{tpu_custom_call.1} parent=1 // pred_check
      _
    $region19: #{tpu_custom_call.1} parent=1 // pred_check_branch
      %51 = sbr.rel (0) target = $region21
    $region20: #{tpu_custom_call.1} parent=1 // pred_region
      %52 = dma.done [#allocation6], 256
    $region21: #{tpu_custom_call.1} parent=1 // pred_fallthru
      _
    // Predicated region
    $region22: #{tpu_custom_call.1} parent=1 // pred_check
      _
    $region23: #{tpu_custom_call.1} parent=1 // pred_check_branch
      %54 = sbr.rel (0) target = $region25
    $region24: #{tpu_custom_call.1} parent=1 // pred_region
      %55 = dma.done [#allocation6], 256
    $region25: #{tpu_custom_call.1} parent=1 // pred_fallthru
      _
    %v56 = vld [vmem:[#allocation2] sm:$0xff]
    %v57 = vld [vmem:[#allocation2 + $0x8] sm:$0xff]
    %v58 = vld [vmem:[#allocation5] sm:$0xff]
    %v59 = vld [vmem:[#allocation5 + $0x8] sm:$0xff]
    %v60 = vld [vmem:[#allocation7] sm:$0xff]
    %v61 = vld [vmem:[#allocation7 + $0x8] sm:$0xff]
    %v62 = vmul.f32 %v56, %v58
    %v63 = vmul.f32 %v57, %v59
    %v64 = vadd.f32 %v62, %v60
    %v65 = vadd.f32 %v63, %v61
    %66 = vst [vmem:[#allocation8] sm:$0xff] %v64
    %67 = vst [vmem:[#allocation8 + $0x8] sm:$0xff] %v65
    // Predicated region
    $region26: #{tpu_custom_call.1} parent=1 // pred_check
      _
    $region27: #{tpu_custom_call.1} parent=1 // pred_check_branch
      %69 = sbr.rel (0) target = $region29
    $region28: #{tpu_custom_call.1} parent=1 // pred_region
      %s71 = ssub.s32 256, 256
      %72 = vsyncadd [#allocation4], %s71
      %s73 = sshll.u32 [#allocation8], 4
      %s74 = int_to_ptr.vmem [resolvable:$true] %s73
      %79 = dma.vmem_to_hbm [thread:$0]  %s74, 256, %s3, [#allocation4], 128, 128, 8
    $region29: #{tpu_custom_call.1} parent=1 // pred_fallthru
      _
    // Predicated region
    $region30: #{tpu_custom_call.1} parent=1 // pred_check
      _
    $region31: #{tpu_custom_call.1} parent=1 // pred_check_branch
      %81 = sbr.rel (0) target = $region33
    $region32: #{tpu_custom_call.1} parent=1 // pred_region
      %82 = dma.done [#allocation4], 256
    $region33: #{tpu_custom_call.1} parent=1 // pred_fallthru
      _
    %83 = vsyncpa [#allocation3], 1
    %84 = vsyncpa [#allocation6], 1
    %85 = vsyncpa [#allocation4], 1

</llo_original>
